<compile_context>
chip_gen: v5e
topology: v5e:2x2
jax: 0.10.0
libtpu: 0.0.40
codegen_flags: <defaults>
</compile_context>

<pallas_src>
import functools

import jax
import jax.numpy as jnp
from jax.experimental import pallas as pl
from jax.experimental.pallas import tpu as pltpu


def _downsample_kernel(x2_ref, wf_ref, params_ref, out_ref,
                       ssum_ref, ssq_ref, scale_ref, shift_ref,
                       *, bb, T, inv_n, inv_t, eps):
    p = pl.program_id(0)      # 0 = stats pass, 1 = normalize + pool pass
    j = pl.program_id(1)      # row-tile index (bb batches, bb*T rows per tile)

    # Conv1d(k=2, s=2) on this row tile as a single MXU matmul over im2col
    # patches.  NOTE: conv bias intentionally omitted -- training-mode BN
    # subtracts the per-channel batch mean, so a constant bias cancels exactly.
    y = jnp.dot(x2_ref[...], wf_ref[...], preferred_element_type=jnp.float32)

    # ---- pass 0: accumulate per-channel sum / sum-of-squares ---------------
    @pl.when((p == 0) & (j == 0))
    def _():
        ssum_ref[...] = jnp.zeros_like(ssum_ref)
        ssq_ref[...] = jnp.zeros_like(ssq_ref)

    @pl.when(p == 0)
    def _():
        ssum_ref[...] += jnp.sum(y, axis=0, keepdims=True)
        ssq_ref[...] += jnp.sum(y * y, axis=0, keepdims=True)
        # Deterministic placeholder; this block is rewritten in pass 1.
        out_ref[...] = jnp.zeros_like(out_ref)

    # ---- finalize BN affine (once, at the start of pass 1) -----------------
    @pl.when((p == 1) & (j == 0))
    def _():
        mean = ssum_ref[...] * inv_n
        var = ssq_ref[...] * inv_n - mean * mean      # biased var (PyTorch BN, training)
        sc = params_ref[0:1, :] * jax.lax.rsqrt(var + eps)   # gamma folded in
        scale_ref[...] = sc
        shift_ref[...] = params_ref[1:2, :] - mean * sc

    # ---- pass 1: normalize + ReLU + per-batch mean over time ---------------
    @pl.when(p == 1)
    def _():
        yr = jnp.maximum(y * scale_ref[...] + shift_ref[...], 0.0)   # (bb*T, Cout)
        # Segment mean over the T consecutive rows of each batch in this tile
        # (static unroll; pure sublane reductions, no pooling matmul).
        for b in range(bb):
            seg = yr[b * T:(b + 1) * T, :]
            out_ref[pl.ds(b, 1), :] = jnp.sum(seg, axis=0, keepdims=True) * inv_t


def _pick_batches_per_tile(B, T):
    """Smallest batch tile bb (multiple of 8, dividing B) so the (8,128) block
    constraint holds for the (bb*T, Cin*ks) input and (bb, Cout) output blocks;
    fall back to the whole batch (single tile)."""
    for bb in range(1, B):
        if B % bb == 0 and bb % 8 == 0 and (bb * T) % 8 == 0:
            return bb
    return B


def imaging_model_wrapper_forward(x, conv_w, conv_b, bn_gamma, bn_beta):
    """Forward of ImagingModelWrapper (arch='ViTEmb', fusion_stage='middle',
    layers=1):  Conv1d(768->128, k=2, s=2) -> BatchNorm1d (training-mode batch
    stats) -> ReLU -> mean over the time dim.

    x: (B, Cin, L) float32 (PyTorch NCL).  Returns (B, Cout) float32.

    `conv_b` is accepted to mirror the PyTorch parameter set but is unused:
    a constant per-channel bias cancels exactly under training-mode BatchNorm,
    so the module output is unchanged.
    """
    del conv_b
    B, Cin, L = x.shape
    Cout, Cin_w, ks = conv_w.shape
    stride = 2
    assert Cin_w == Cin
    # im2col-as-reshape requires non-overlapping taps (stride == ks) and L % ks == 0.
    assert ks == 2 and stride == ks and L % ks == 0
    T = (L - ks) // stride + 1
    CK = Cin * ks

    # im2col glue (plain JAX): x2[b*T + t, ci*ks + k] = x[b, ci, stride*t + k]
    # TODO(synk): at large B*L this transpose is an extra HBM pass; fold it into
    # the kernel's input DMA (memory_space=pl.ANY + in-kernel tap gather) if it
    # ever dominates the profile.
    x2 = (x.reshape(B, Cin, T, ks)
            .transpose(0, 2, 1, 3)
            .reshape(B * T, CK)
            .astype(jnp.float32))
    wf = conv_w.reshape(Cout, CK).T.astype(jnp.float32)            # (CK, Cout)
    params = jnp.stack([bn_gamma.astype(jnp.float32),
                        bn_beta.astype(jnp.float32)], axis=0)      # (2, Cout)

    bb = _pick_batches_per_tile(B, T)
    n_tiles = B // bb
    RT = bb * T

    kernel = functools.partial(_downsample_kernel, bb=bb, T=T,
                               inv_n=1.0 / (B * T), inv_t=1.0 / T, eps=1e-5)

    return pl.pallas_call(
        kernel,
        out_shape=jax.ShapeDtypeStruct((B, Cout), jnp.float32),
        grid_spec=pltpu.PrefetchScalarGridSpec(
            num_scalar_prefetch=0,
            # grid = (pass, row-tile): pass 0 streams x2 tiles and accumulates
            # BN stats; pass 1 re-streams them (recompute-conv), normalizes,
            # ReLUs and pools.  Conv weight and BN params stay VMEM-resident.
            grid=(2, n_tiles),
            in_specs=[
                pl.BlockSpec((RT, CK), lambda p, j: (j, 0)),
                pl.BlockSpec((CK, Cout), lambda p, j: (0, 0)),   # resident
                pl.BlockSpec((2, Cout), lambda p, j: (0, 0)),    # resident
            ],
            out_specs=pl.BlockSpec((bb, Cout), lambda p, j: (j, 0)),
            scratch_shapes=[
                pltpu.VMEM((1, Cout), jnp.float32),   # per-channel sum
                pltpu.VMEM((1, Cout), jnp.float32),   # per-channel sum of squares
                pltpu.VMEM((1, Cout), jnp.float32),   # gamma * rsqrt(var + eps)
                pltpu.VMEM((1, Cout), jnp.float32),   # beta - mean * scale
            ]),
        compiler_params=pltpu.CompilerParams(
            # Both axes carry the sequential BN-stats reduction -> "arbitrary".
            # TODO(synk): on v7x, split the row axis across the 2 TensorCores
            # with per-core partial stats + a tiny combine step.
            dimension_semantics=("arbitrary", "arbitrary"),
            vmem_limit_bytes=48 * 1024 * 1024),
    )(x2, wf, params)


def _reference(x, conv_w, conv_b, bn_gamma, bn_beta):
    """Pure-JAX reference of the PyTorch forward (includes the conv bias, to
    verify that dropping it inside the kernel is exact)."""
    B, Cin, L = x.shape
    Cout, _, ks = conv_w.shape
    T = L // ks
    x2 = x.reshape(B, Cin, T, ks).transpose(0, 2, 1, 3).reshape(B * T, Cin * ks)
    y = x2 @ conv_w.reshape(Cout, Cin * ks).T + conv_b[None, :]
    mean = y.mean(axis=0)
    var = y.var(axis=0)                      # biased, as PyTorch BN in training
    yn = (y - mean) / jnp.sqrt(var + 1e-5) * bn_gamma + bn_beta
    yr = jnp.maximum(yn, 0.0)
    return yr.reshape(B, T, Cout).mean(axis=1)


if __name__ == "__main__":
    # Module-implied dims: dim=768 ('emb' arch), out_dim=128, kernel_size=2.
    # B=16, L=8 keeps everything small but gives a real 2-tile grid.
    B, DIM, L = 16, 768, 8
    OUT_DIM, KS = 128, 2

    key = jax.random.PRNGKey(0)
    k_x, k_w, k_b = jax.random.split(key, 3)

    x = jax.random.normal(k_x, (B, DIM, L), dtype=jnp.float32)

    # Deterministic parameter init (shapes from Conv1d/BatchNorm1d in __init__).
    # Conv weight: xavier_uniform_ (module does this for p.dim() > 1).
    fan_in, fan_out = DIM * KS, OUT_DIM * KS
    bound = (6.0 / (fan_in + fan_out)) ** 0.5
    conv_w = jax.random.uniform(k_w, (OUT_DIM, DIM, KS), jnp.float32,
                                minval=-bound, maxval=bound)
    b_bound = 1.0 / (fan_in ** 0.5)
    conv_b = jax.random.uniform(k_b, (OUT_DIM,), jnp.float32,
                                minval=-b_bound, maxval=b_bound)
    bn_gamma = jnp.ones((OUT_DIM,), jnp.float32)
    bn_beta = jnp.zeros((OUT_DIM,), jnp.float32)

    out = imaging_model_wrapper_forward(x, conv_w, conv_b, bn_gamma, bn_beta)
    out = jax.block_until_ready(out)
    assert out.shape == (B, OUT_DIM) and out.dtype == jnp.float32

    ref = jax.block_until_ready(_reference(x, conv_w, conv_b, bn_gamma, bn_beta))
    assert jnp.allclose(out, ref, rtol=1e-3, atol=1e-3), (
        float(jnp.max(jnp.abs(out - ref))))

    print("KERNEL_OK")
</pallas_src>

<mosaic_0001>
module attributes {stable_mosaic.version = 11 : i64} {
  func.func @_downsample_kernel(%arg0: i32, %arg1: i32, %arg2: memref<32x1536xf32, #tpu.memory_space<vmem>>, %arg3: memref<1536x128xf32, #tpu.memory_space<vmem>>, %arg4: memref<2x128xf32, #tpu.memory_space<vmem>>, %arg5: memref<8x128xf32, #tpu.memory_space<vmem>>, %arg6: memref<1x128xf32, #tpu.memory_space<vmem>>, %arg7: memref<1x128xf32, #tpu.memory_space<vmem>>, %arg8: memref<1x128xf32, #tpu.memory_space<vmem>>, %arg9: memref<1x128xf32, #tpu.memory_space<vmem>>) attributes {dimension_semantics = [#tpu.dimension_semantics<arbitrary>, #tpu.dimension_semantics<arbitrary>], iteration_bounds = array<i64: 2, 2>, scalar_prefetch = 0 : i64, scratch_operands = 4 : i64, tpu.core_type = #tpu.core_type<tc>, window_params = [{transform_indices = @transform_0, window_bounds = array<i64: 32, 1536>}, {pipeline_mode = #tpu.pipeline_mode<synchronous>, transform_indices = @transform_1, window_bounds = array<i64: 1536, 128>}, {pipeline_mode = #tpu.pipeline_mode<synchronous>, transform_indices = @transform_2, window_bounds = array<i64: 2, 128>}, {transform_indices = @transform_3, window_bounds = array<i64: 8, 128>}]} {
    %c0 = arith.constant 0 : index
    %c0_0 = arith.constant 0 : index
    %0 = vector.load %arg2[%c0, %c0_0] : memref<32x1536xf32, #tpu.memory_space<vmem>>, vector<32x1536xf32>
    %c0_1 = arith.constant 0 : index
    %c0_2 = arith.constant 0 : index
    %1 = vector.load %arg3[%c0_1, %c0_2] : memref<1536x128xf32, #tpu.memory_space<vmem>>, vector<1536x128xf32>
    %cst = arith.constant dense<0.000000e+00> : vector<32x128xf32>
    %2 = tpu.matmul %0, %1, %cst {dimension_numbers = #tpu.dot_dimension_numbers<[1], [0], [0], [1], [0, 0, 1, 1], [], []>} : vector<32x1536xf32>, vector<1536x128xf32>, vector<32x128xf32> -> vector<32x128xf32>
    %c0_i32 = arith.constant 0 : i32
    %3 = arith.cmpi eq, %arg0, %c0_i32 : i32
    %c0_i32_3 = arith.constant 0 : i32
    %4 = arith.cmpi eq, %arg1, %c0_i32_3 : i32
    %5 = arith.andi %3, %4 : i1
    %6 = arith.extui %5 : i1 to i32
    %c0_i32_4 = arith.constant 0 : i32
    %7 = arith.cmpi ne, %6, %c0_i32_4 : i32
    scf.if %7 {
      %cst_11 = arith.constant 0.000000e+00 : f32
      %19 = vector.broadcast %cst_11 : f32 to vector<1x128xf32>
      %c0_12 = arith.constant 0 : index
      %c0_13 = arith.constant 0 : index
      %20 = vector.load %arg6[%c0_12, %c0_13] : memref<1x128xf32, #tpu.memory_space<vmem>>, vector<1x128xf32>
      tpu.vector_store %arg6[%c0_12, %c0_13], %19 {strides = array<i32>} : memref<1x128xf32, #tpu.memory_space<vmem>>, vector<1x128xf32>,
      %cst_14 = arith.constant 0.000000e+00 : f32
      %21 = vector.broadcast %cst_14 : f32 to vector<1x128xf32>
      %c0_15 = arith.constant 0 : index
      %c0_16 = arith.constant 0 : index
      %22 = vector.load %arg7[%c0_15, %c0_16] : memref<1x128xf32, #tpu.memory_space<vmem>>, vector<1x128xf32>
      tpu.vector_store %arg7[%c0_15, %c0_16], %21 {strides = array<i32>} : memref<1x128xf32, #tpu.memory_space<vmem>>, vector<1x128xf32>,
    } else {
    }
    %c0_i32_5 = arith.constant 0 : i32
    %8 = arith.cmpi eq, %arg0, %c0_i32_5 : i32
    %9 = arith.extui %8 : i1 to i32
    %c0_i32_6 = arith.constant 0 : i32
    %10 = arith.cmpi ne, %9, %c0_i32_6 : i32
    scf.if %10 {
      %c0_11 = arith.constant 0 : index
      %c0_12 = arith.constant 0 : index
      %19 = vector.load %arg6[%c0_11, %c0_12] : memref<1x128xf32, #tpu.memory_space<vmem>>, vector<1x128xf32>
      %cst_13 = arith.constant dense<0.000000e+00> : vector<128xf32>
      %20 = vector.multi_reduction <add>, %2, %cst_13 [0] : vector<32x128xf32> to vector<128xf32>
      %21 = vector.shape_cast %20 : vector<128xf32> to vector<1x128xf32>
      %22 = arith.addf %19, %21 : vector<1x128xf32>
      %c0_14 = arith.constant 0 : index
      %c0_15 = arith.constant 0 : index
      %23 = vector.load %arg6[%c0_14, %c0_15] : memref<1x128xf32, #tpu.memory_space<vmem>>, vector<1x128xf32>
      tpu.vector_store %arg6[%c0_14, %c0_15], %22 {strides = array<i32>} : memref<1x128xf32, #tpu.memory_space<vmem>>, vector<1x128xf32>,
      %c0_16 = arith.constant 0 : index
      %c0_17 = arith.constant 0 : index
      %24 = vector.load %arg7[%c0_16, %c0_17] : memref<1x128xf32, #tpu.memory_space<vmem>>, vector<1x128xf32>
      %25 = arith.mulf %2, %2 : vector<32x128xf32>
      %cst_18 = arith.constant dense<0.000000e+00> : vector<128xf32>
      %26 = vector.multi_reduction <add>, %25, %cst_18 [0] : vector<32x128xf32> to vector<128xf32>
      %27 = vector.shape_cast %26 : vector<128xf32> to vector<1x128xf32>
      %28 = arith.addf %24, %27 : vector<1x128xf32>
      %c0_19 = arith.constant 0 : index
      %c0_20 = arith.constant 0 : index
      %29 = vector.load %arg7[%c0_19, %c0_20] : memref<1x128xf32, #tpu.memory_space<vmem>>, vector<1x128xf32>
      tpu.vector_store %arg7[%c0_19, %c0_20], %28 {strides = array<i32>} : memref<1x128xf32, #tpu.memory_space<vmem>>, vector<1x128xf32>,
      %cst_21 = arith.constant 0.000000e+00 : f32
      %30 = vector.broadcast %cst_21 : f32 to vector<8x128xf32>
      %c0_22 = arith.constant 0 : index
      %c0_23 = arith.constant 0 : index
      %31 = vector.load %arg5[%c0_22, %c0_23] : memref<8x128xf32, #tpu.memory_space<vmem>>, vector<8x128xf32>
      tpu.vector_store %arg5[%c0_22, %c0_23], %30 {strides = array<i32>} : memref<8x128xf32, #tpu.memory_space<vmem>>, vector<8x128xf32>,
    } else {
    }
    %c1_i32 = arith.constant 1 : i32
    %11 = arith.cmpi eq, %arg0, %c1_i32 : i32
    %c0_i32_7 = arith.constant 0 : i32
    %12 = arith.cmpi eq, %arg1, %c0_i32_7 : i32
    %13 = arith.andi %11, %12 : i1
    %14 = arith.extui %13 : i1 to i32
    %c0_i32_8 = arith.constant 0 : i32
    %15 = arith.cmpi ne, %14, %c0_i32_8 : i32
    scf.if %15 {
      %c0_11 = arith.constant 0 : index
      %c0_12 = arith.constant 0 : index
      %19 = vector.load %arg6[%c0_11, %c0_12] : memref<1x128xf32, #tpu.memory_space<vmem>>, vector<1x128xf32>
      %cst_13 = arith.constant 1.562500e-02 : f32
      %20 = vector.broadcast %cst_13 : f32 to vector<1x128xf32>
      %21 = arith.mulf %19, %20 : vector<1x128xf32>
      %c0_14 = arith.constant 0 : index
      %c0_15 = arith.constant 0 : index
      %22 = vector.load %arg7[%c0_14, %c0_15] : memref<1x128xf32, #tpu.memory_space<vmem>>, vector<1x128xf32>
      %cst_16 = arith.constant 1.562500e-02 : f32
      %23 = vector.broadcast %cst_16 : f32 to vector<1x128xf32>
      %24 = arith.mulf %22, %23 : vector<1x128xf32>
      %25 = arith.mulf %21, %21 : vector<1x128xf32>
      %26 = arith.subf %24, %25 : vector<1x128xf32>
      %c0_17 = arith.constant 0 : index
      %c0_18 = arith.constant 0 : index
      %27 = vector.load %arg4[%c0_17, %c0_18] : memref<2x128xf32, #tpu.memory_space<vmem>>, vector<1x128xf32>
      %cst_19 = arith.constant 9.99999974E-6 : f32
      %28 = vector.broadcast %cst_19 : f32 to vector<1x128xf32>
      %29 = arith.addf %26, %28 : vector<1x128xf32>
      %30 = math.rsqrt %29 : vector<1x128xf32>
      %31 = arith.mulf %27, %30 : vector<1x128xf32>
      %c0_20 = arith.constant 0 : index
      %c0_21 = arith.constant 0 : index
      %32 = vector.load %arg8[%c0_20, %c0_21] : memref<1x128xf32, #tpu.memory_space<vmem>>, vector<1x128xf32>
      tpu.vector_store %arg8[%c0_20, %c0_21], %31 {strides = array<i32>} : memref<1x128xf32, #tpu.memory_space<vmem>>, vector<1x128xf32>,
      %c1 = arith.constant 1 : index
      %c0_22 = arith.constant 0 : index
      %33 = vector.load %arg4[%c1, %c0_22] : memref<2x128xf32, #tpu.memory_space<vmem>>, vector<1x128xf32>
      %34 = arith.mulf %21, %31 : vector<1x128xf32>
      %35 = arith.subf %33, %34 : vector<1x128xf32>
      %c0_23 = arith.constant 0 : index
      %c0_24 = arith.constant 0 : index
      %36 = vector.load %arg9[%c0_23, %c0_24] : memref<1x128xf32, #tpu.memory_space<vmem>>, vector<1x128xf32>
      tpu.vector_store %arg9[%c0_23, %c0_24], %35 {strides = array<i32>} : memref<1x128xf32, #tpu.memory_space<vmem>>, vector<1x128xf32>,
    } else {
    }
    %c1_i32_9 = arith.constant 1 : i32
    %16 = arith.cmpi eq, %arg0, %c1_i32_9 : i32
    %17 = arith.extui %16 : i1 to i32
    %c0_i32_10 = arith.constant 0 : i32
    %18 = arith.cmpi ne, %17, %c0_i32_10 : i32
    scf.if %18 {
      %c0_11 = arith.constant 0 : index
      %c0_12 = arith.constant 0 : index
      %19 = vector.load %arg8[%c0_11, %c0_12] : memref<1x128xf32, #tpu.memory_space<vmem>>, vector<1x128xf32>
      %20 = vector.broadcast %19 : vector<1x128xf32> to vector<32x128xf32>
      %21 = arith.mulf %2, %20 : vector<32x128xf32>
      %c0_13 = arith.constant 0 : index
      %c0_14 = arith.constant 0 : index
      %22 = vector.load %arg9[%c0_13, %c0_14] : memref<1x128xf32, #tpu.memory_space<vmem>>, vector<1x128xf32>
      %23 = vector.broadcast %22 : vector<1x128xf32> to vector<32x128xf32>
      %24 = arith.addf %21, %23 : vector<32x128xf32>
      %cst_15 = arith.constant 0.000000e+00 : f32
      %25 = vector.broadcast %cst_15 : f32 to vector<32x128xf32>
      %26 = arith.maximumf %24, %25 : vector<32x128xf32>
      %27 = vector.extract_strided_slice %26 {offsets = [0, 0], sizes = [4, 128], strides = [1, 1]} : vector<32x128xf32> to vector<4x128xf32>
      %cst_16 = arith.constant dense<0.000000e+00> : vector<128xf32>
      %28 = vector.multi_reduction <add>, %27, %cst_16 [0] : vector<4x128xf32> to vector<128xf32>
      %29 = vector.shape_cast %28 : vector<128xf32> to vector<1x128xf32>
      %cst_17 = arith.constant 2.500000e-01 : f32
      %30 = vector.broadcast %cst_17 : f32 to vector<1x128xf32>
      %31 = arith.mulf %29, %30 : vector<1x128xf32>
      %c0_18 = arith.constant 0 : index
      %c0_19 = arith.constant 0 : index
      %32 = vector.load %arg5[%c0_18, %c0_19] : memref<8x128xf32, #tpu.memory_space<vmem>>, vector<1x128xf32>
      tpu.vector_store %arg5[%c0_18, %c0_19], %31 {strides = array<i32>} : memref<8x128xf32, #tpu.memory_space<vmem>>, vector<1x128xf32>,
      %33 = vector.extract_strided_slice %26 {offsets = [4, 0], sizes = [4, 128], strides = [1, 1]} : vector<32x128xf32> to vector<4x128xf32>
      %cst_20 = arith.constant dense<0.000000e+00> : vector<128xf32>
      %34 = vector.multi_reduction <add>, %33, %cst_20 [0] : vector<4x128xf32> to vector<128xf32>
      %35 = vector.shape_cast %34 : vector<128xf32> to vector<1x128xf32>
      %cst_21 = arith.constant 2.500000e-01 : f32
      %36 = vector.broadcast %cst_21 : f32 to vector<1x128xf32>
      %37 = arith.mulf %35, %36 : vector<1x128xf32>
      %c1 = arith.constant 1 : index
      %c0_22 = arith.constant 0 : index
      %38 = vector.load %arg5[%c1, %c0_22] : memref<8x128xf32, #tpu.memory_space<vmem>>, vector<1x128xf32>
      tpu.vector_store %arg5[%c1, %c0_22], %37 {strides = array<i32>} : memref<8x128xf32, #tpu.memory_space<vmem>>, vector<1x128xf32>,
      %39 = vector.extract_strided_slice %26 {offsets = [8, 0], sizes = [4, 128], strides = [1, 1]} : vector<32x128xf32> to vector<4x128xf32>
      %cst_23 = arith.constant dense<0.000000e+00> : vector<128xf32>
      %40 = vector.multi_reduction <add>, %39, %cst_23 [0] : vector<4x128xf32> to vector<128xf32>
      %41 = vector.shape_cast %40 : vector<128xf32> to vector<1x128xf32>
      %cst_24 = arith.constant 2.500000e-01 : f32
      %42 = vector.broadcast %cst_24 : f32 to vector<1x128xf32>
      %43 = arith.mulf %41, %42 : vector<1x128xf32>
      %c2 = arith.constant 2 : index
      %c0_25 = arith.constant 0 : index
      %44 = vector.load %arg5[%c2, %c0_25] : memref<8x128xf32, #tpu.memory_space<vmem>>, vector<1x128xf32>
      tpu.vector_store %arg5[%c2, %c0_25], %43 {strides = array<i32>} : memref<8x128xf32, #tpu.memory_space<vmem>>, vector<1x128xf32>,
      %45 = vector.extract_strided_slice %26 {offsets = [12, 0], sizes = [4, 128], strides = [1, 1]} : vector<32x128xf32> to vector<4x128xf32>
      %cst_26 = arith.constant dense<0.000000e+00> : vector<128xf32>
      %46 = vector.multi_reduction <add>, %45, %cst_26 [0] : vector<4x128xf32> to vector<128xf32>
      %47 = vector.shape_cast %46 : vector<128xf32> to vector<1x128xf32>
      %cst_27 = arith.constant 2.500000e-01 : f32
      %48 = vector.broadcast %cst_27 : f32 to vector<1x128xf32>
      %49 = arith.mulf %47, %48 : vector<1x128xf32>
      %c3 = arith.constant 3 : index
      %c0_28 = arith.constant 0 : index
      %50 = vector.load %arg5[%c3, %c0_28] : memref<8x128xf32, #tpu.memory_space<vmem>>, vector<1x128xf32>
      tpu.vector_store %arg5[%c3, %c0_28], %49 {strides = array<i32>} : memref<8x128xf32, #tpu.memory_space<vmem>>, vector<1x128xf32>,
      %51 = vector.extract_strided_slice %26 {offsets = [16, 0], sizes = [4, 128], strides = [1, 1]} : vector<32x128xf32> to vector<4x128xf32>
      %cst_29 = arith.constant dense<0.000000e+00> : vector<128xf32>
      %52 = vector.multi_reduction <add>, %51, %cst_29 [0] : vector<4x128xf32> to vector<128xf32>
      %53 = vector.shape_cast %52 : vector<128xf32> to vector<1x128xf32>
      %cst_30 = arith.constant 2.500000e-01 : f32
      %54 = vector.broadcast %cst_30 : f32 to vector<1x128xf32>
      %55 = arith.mulf %53, %54 : vector<1x128xf32>
      %c4 = arith.constant 4 : index
      %c0_31 = arith.constant 0 : index
      %56 = vector.load %arg5[%c4, %c0_31] : memref<8x128xf32, #tpu.memory_space<vmem>>, vector<1x128xf32>
      tpu.vector_store %arg5[%c4, %c0_31], %55 {strides = array<i32>} : memref<8x128xf32, #tpu.memory_space<vmem>>, vector<1x128xf32>,
      %57 = vector.extract_strided_slice %26 {offsets = [20, 0], sizes = [4, 128], strides = [1, 1]} : vector<32x128xf32> to vector<4x128xf32>
      %cst_32 = arith.constant dense<0.000000e+00> : vector<128xf32>
      %58 = vector.multi_reduction <add>, %57, %cst_32 [0] : vector<4x128xf32> to vector<128xf32>
      %59 = vector.shape_cast %58 : vector<128xf32> to vector<1x128xf32>
      %cst_33 = arith.constant 2.500000e-01 : f32
      %60 = vector.broadcast %cst_33 : f32 to vector<1x128xf32>
      %61 = arith.mulf %59, %60 : vector<1x128xf32>
      %c5 = arith.constant 5 : index
      %c0_34 = arith.constant 0 : index
      %62 = vector.load %arg5[%c5, %c0_34] : memref<8x128xf32, #tpu.memory_space<vmem>>, vector<1x128xf32>
      tpu.vector_store %arg5[%c5, %c0_34], %61 {strides = array<i32>} : memref<8x128xf32, #tpu.memory_space<vmem>>, vector<1x128xf32>,
      %63 = vector.extract_strided_slice %26 {offsets = [24, 0], sizes = [4, 128], strides = [1, 1]} : vector<32x128xf32> to vector<4x128xf32>
      %cst_35 = arith.constant dense<0.000000e+00> : vector<128xf32>
      %64 = vector.multi_reduction <add>, %63, %cst_35 [0] : vector<4x128xf32> to vector<128xf32>
      %65 = vector.shape_cast %64 : vector<128xf32> to vector<1x128xf32>
      %cst_36 = arith.constant 2.500000e-01 : f32
      %66 = vector.broadcast %cst_36 : f32 to vector<1x128xf32>
      %67 = arith.mulf %65, %66 : vector<1x128xf32>
      %c6 = arith.constant 6 : index
      %c0_37 = arith.constant 0 : index
      %68 = vector.load %arg5[%c6, %c0_37] : memref<8x128xf32, #tpu.memory_space<vmem>>, vector<1x128xf32>
      tpu.vector_store %arg5[%c6, %c0_37], %67 {strides = array<i32>} : memref<8x128xf32, #tpu.memory_space<vmem>>, vector<1x128xf32>,
      %69 = vector.extract_strided_slice %26 {offsets = [28, 0], sizes = [4, 128], strides = [1, 1]} : vector<32x128xf32> to vector<4x128xf32>
      %cst_38 = arith.constant dense<0.000000e+00> : vector<128xf32>
      %70 = vector.multi_reduction <add>, %69, %cst_38 [0] : vector<4x128xf32> to vector<128xf32>
      %71 = vector.shape_cast %70 : vector<128xf32> to vector<1x128xf32>
      %cst_39 = arith.constant 2.500000e-01 : f32
      %72 = vector.broadcast %cst_39 : f32 to vector<1x128xf32>
      %73 = arith.mulf %71, %72 : vector<1x128xf32>
      %c7 = arith.constant 7 : index
      %c0_40 = arith.constant 0 : index
      %74 = vector.load %arg5[%c7, %c0_40] : memref<8x128xf32, #tpu.memory_space<vmem>>, vector<1x128xf32>
      tpu.vector_store %arg5[%c7, %c0_40], %73 {strides = array<i32>} : memref<8x128xf32, #tpu.memory_space<vmem>>, vector<1x128xf32>,
    } else {
    }
    return
  }
  func.func @transform_0(%arg0: i32, %arg1: i32) -> (i32, i32) {
    %c0_i32 = arith.constant 0 : i32
    %c0_i32_0 = arith.constant 0 : i32
    return %arg1, %c0_i32 : i32, i32
  }
  func.func @transform_1(%arg0: i32, %arg1: i32) -> (i32, i32) {
    %c0_i32 = arith.constant 0 : i32
    %c0_i32_0 = arith.constant 0 : i32
    %c0_i32_1 = arith.constant 0 : i32
    return %c0_i32, %c0_i32_0 : i32, i32
  }
  func.func @transform_2(%arg0: i32, %arg1: i32) -> (i32, i32) {
    %c0_i32 = arith.constant 0 : i32
    %c0_i32_0 = arith.constant 0 : i32
    %c0_i32_1 = arith.constant 0 : i32
    return %c0_i32, %c0_i32_0 : i32, i32
  }
  func.func @transform_3(%arg0: i32, %arg1: i32) -> (i32, i32) {
    %c0_i32 = arith.constant 0 : i32
    %c0_i32_0 = arith.constant 0 : i32
    return %arg1, %c0_i32 : i32, i32
  }
}

</mosaic_0001>

<llo_original>
// kernel: tpu_custom_call.1
$region0: #{tpu_custom_call.1}
  #allocation0 [shape = 'u32[]', space=smem, size = 0x4, offset = 0x4, fixed_abs, tag = 'smem constant byte address 0x4 - core index']
  #allocation1 [shape = 'u32[72,128]{1,0:T(1,128)}', space=vmem, size = 0x9000, scoped, tag = 'internal scratch']
  #allocation2 [shape = 'f32[1,128]{1,0:T(1,128)}', space=vmem, size = 0x200, scoped, tag = 'scratch operand']
  #allocation3 [shape = 'f32[1,128]{1,0:T(1,128)}', space=vmem, size = 0x200, scoped, tag = 'scratch operand']
  #allocation4 [shape = 'f32[1,128]{1,0:T(1,128)}', space=vmem, size = 0x200, scoped, tag = 'scratch operand']
  #allocation5 [shape = 'f32[1,128]{1,0:T(1,128)}', space=vmem, size = 0x200, scoped, tag = 'scratch operand']
  %s0 = inlined_call_operand.hbm [shape: f32[64,1536], index: 0, kind: input, shape index: {}]
  %s1 = inlined_call_operand.hbm [shape: f32[1536,128], index: 1, kind: input, shape index: {}]
  %s2 = inlined_call_operand.hbm [shape: f32[2,128], index: 2, kind: input, shape index: {}]
  %s3 = inlined_call_operand.hbm [shape: f32[16,128], index: 3, kind: output, shape index: {}]
  %s4 = sld [smem:[#allocation0]]
  $region73: #{tpu_custom_call.1} parent=0
    _
  %s6 = ssub.s32 1, %s4
  %s7 = scalar_select 0, %s6, %s4
  $region1: #{tpu_custom_call.1} parent=0
    #allocation6 [shape = 'u8[393216]{0}', space=vmem, size = 0x60000, scoped, tag = 'input window, operand 0']
    #allocation7 [shape = 's32[2]{0}', space=sflag, size = 0x8, scoped, tag = 'scoped memory for tpu_custom_call.1']
    #allocation8 [shape = 's32[2]{0}', space=sflag, size = 0x8, scoped, tag = 'scoped memory for tpu_custom_call.1']
    #allocation9 [shape = 'u8[786432]{0}', space=vmem, size = 0xc0000, scoped, tag = 'input window, operand 1, single buffered']
    #allocation10 [shape = 's32[1]{0}', space=sflag, size = 0x4, scoped, tag = 'scoped memory for tpu_custom_call.1']
    #allocation11 [shape = 'u8[1024]{0}', space=vmem, size = 0x400, scoped, tag = 'input window, operand 2, single buffered']
    #allocation12 [shape = 'u8[8192]{0}', space=vmem, size = 0x2000, scoped, tag = 'output window, operand 0']
    %8 = vsyncpa [#allocation7], 0
    %s9 = scalar_lea.sflag [#allocation7], 1
    %10 = vsyncpa %s9, 0
    %11 = vsyncpa [#allocation10], 0
    %12 = vsyncpa [#allocation8], 0
    %s13 = scalar_lea.sflag [#allocation8], 1
    %14 = vsyncpa %s13, 0
    loop: start=0, step=1, limit=6
    $region2: #{tpu_custom_call.1} parent=1 // loop_pre_header
      _
    $region3: #{tpu_custom_call.1} parent=1 // loop_header
      %s16 = sphi 0, %s20
      %p17 = scmp.ge.s32.totalorder %s16, 6
      %s23 = sphi 0, %s35
      %s24 = sphi 0, %s31
      %s25 = sphi 0, %s23
      %s26 = sphi 0, %s24
      %s27 = sphi 0, %s25
      %s28 = sphi 0, %s26
      %s38 = sphi 0, %s40
      %s41 = sphi 0, %s38
      %s42 = sphi 0, %s41
      %s58 = sphi 0, %s42
      %s62 = sphi 0, %s62
      %s64 = sphi 0, %s62
      %s65 = sphi 0, %s64
      %s79 = sphi 0, %s65
      %s83 = sphi 0, %s83
      %s85 = sphi 0, %s83
      %s86 = sphi 0, %s85
      %s100 = sphi 0, %s86
      %s106 = sphi 0, %s108
      %s109 = sphi 0, %s106
      %s110 = sphi 0, %s109
      %s126 = sphi 0, %s110
    $region4: #{tpu_custom_call.1} parent=1 // loop_header_branch
      %19 = sbr.rel (%p17) target = $region8
    $region5: #{tpu_custom_call.1} parent=1 // loop_body
      %s21 = ssub.s32 %s16, 1
      %s22 = ssub.s32 %s16, 2
      %s29 = sadd.s32 1, %s24
      %p30 = scmp.ge.s32.totalorder %s29, 2
      %s31 = scalar_select %p30, 0, %s29
      %s32 = sadd.s32 1, %s23
      %s33 = scalar_select %p30, %s32, %s23
      %p34 = scmp.ge.s32.totalorder %s33, 2
      %s35 = scalar_select %p34, 0, %s33
      %s36 = ssub.s32 %s24, %s31
      %p37 = scmp.eq.s32.totalorder %s36, 0
      %s39 = sadd.s32 %s38, 1
      %s40 = scalar_select %p37, %s38, %s39
      %p43 = pneg %p37
      %p44 = scmp.eq.s32.totalorder %s16, 3
      %p45 = por %p43, %p44
      %p46 = scmp.ne.s32.totalorder %s38, %s41
      %p47 = scmp.eq.s32.totalorder %s16, 0
      %p48 = por %p46, %p47
      %p49 = scmp.ne.s32.totalorder %s38, %s41
      %p50 = scmp.eq.s32.totalorder %s21, 3
      %p51 = por %p49, %p50
      %p52 = scmp.ne.s32.totalorder %s41, %s42
      %p53 = scmp.eq.s32.totalorder %s21, 0
      %p54 = por %p52, %p53
      %p55 = scmp.ne.s32.totalorder %s41, %s42
      %p56 = scmp.eq.s32.totalorder %s22, 3
      %p57 = por %p55, %p56
      %p59 = scmp.ne.s32.totalorder %s42, %s58
      %p60 = scmp.eq.s32.totalorder %s22, 0
      %p61 = por %p59, %p60
      %s63 = sadd.s32 %s62, 1
      %p66 = scmp.eq.s32.totalorder %s16, 3
      %p67 = scmp.ne.s32.totalorder %s62, %s64
      %p68 = scmp.eq.s32.totalorder %s16, 0
      %p69 = por %p67, %p68
      %p70 = scmp.ne.s32.totalorder %s62, %s64
      %p71 = scmp.eq.s32.totalorder %s21, 3
      %p72 = por %p70, %p71
      %p73 = scmp.ne.s32.totalorder %s64, %s65
      %p74 = scmp.eq.s32.totalorder %s21, 0
      %p75 = por %p73, %p74
      %p76 = scmp.ne.s32.totalorder %s64, %s65
      %p77 = scmp.eq.s32.totalorder %s22, 3
      %p78 = por %p76, %p77
      %p80 = scmp.ne.s32.totalorder %s65, %s79
      %p81 = scmp.eq.s32.totalorder %s22, 0
      %p82 = por %p80, %p81
      %s84 = sadd.s32 %s83, 1
      %p87 = scmp.eq.s32.totalorder %s16, 3
      %p88 = scmp.ne.s32.totalorder %s83, %s85
      %p89 = scmp.eq.s32.totalorder %s16, 0
      %p90 = por %p88, %p89
      %p91 = scmp.ne.s32.totalorder %s83, %s85
      %p92 = scmp.eq.s32.totalorder %s21, 3
      %p93 = por %p91, %p92
      %p94 = scmp.ne.s32.totalorder %s85, %s86
      %p95 = scmp.eq.s32.totalorder %s21, 0
      %p96 = por %p94, %p95
      %p97 = scmp.ne.s32.totalorder %s85, %s86
      %p98 = scmp.eq.s32.totalorder %s22, 3
      %p99 = por %p97, %p98
      %p101 = scmp.ne.s32.totalorder %s86, %s100
      %p102 = scmp.eq.s32.totalorder %s22, 0
      %p103 = por %p101, %p102
      %s104 = ssub.s32 %s24, %s31
      %p105 = scmp.eq.s32.totalorder %s104, 0
      %s107 = sadd.s32 %s106, 1
      %s108 = scalar_select %p105, %s106, %s107
      %p111 = pneg %p105
      %p112 = scmp.eq.s32.totalorder %s16, 3
      %p113 = por %p111, %p112
      %p114 = scmp.ne.s32.totalorder %s106, %s109
      %p115 = scmp.eq.s32.totalorder %s16, 0
      %p116 = por %p114, %p115
      %p117 = scmp.ne.s32.totalorder %s106, %s109
      %p118 = scmp.eq.s32.totalorder %s21, 3
      %p119 = por %p117, %p118
      %p120 = scmp.ne.s32.totalorder %s109, %s110
      %p121 = scmp.eq.s32.totalorder %s21, 0
      %p122 = por %p120, %p121
      %p123 = scmp.ne.s32.totalorder %s109, %s110
      %p124 = scmp.eq.s32.totalorder %s22, 3
      %p125 = por %p123, %p124
      %p127 = scmp.ne.s32.totalorder %s110, %s126
      %p128 = scmp.eq.s32.totalorder %s22, 0
      %p129 = por %p127, %p128
      %p130 = scmp.le.s32.totalorder 1, %s16
      %p131 = scmp.lt.s32.totalorder %s16, 5
      %p132 = pnand %p130, %p131
      %p133 = pneg %p132
      // Predicated region
      $region9: #{tpu_custom_call.1} parent=5 // pred_check
        _
      $region10: #{tpu_custom_call.1} parent=5 // pred_check_branch
        %135 = sbr.rel (%p132) target = $region12
      $region11: #{tpu_custom_call.1} parent=5 // pred_region
        %s136 = ssub.s32 %s16, 1
        // Predicated region
        $region13: #{tpu_custom_call.1} parent=11 // pred_check
          %p137 = pneg %p75
        $region14: #{tpu_custom_call.1} parent=11 // pred_check_branch
          %139 = sbr.rel (%p137) target = $region16
        $region15: #{tpu_custom_call.1} parent=11 // pred_region
          %141 = vsyncadd [#allocation10], 0
          %s142 = sshll.u32 %s1, 4
          %s143 = int_to_ptr.hbm [resolvable:$true] %s142
          %s144 = sshll.u32 [#allocation9], 4
          %s145 = int_to_ptr.vmem [resolvable:$true] %s144
          %150 = dma.hbm_to_vmem [thread:$0]  %s143, 24576, %s145, [#allocation10], 128, 128, 8
        $region16: #{tpu_custom_call.1} parent=11 // pred_fallthru
          _
        // Predicated region
        $region17: #{tpu_custom_call.1} parent=11 // pred_check
          %p151 = pneg %p96
        $region18: #{tpu_custom_call.1} parent=11 // pred_check_branch
          %153 = sbr.rel (%p151) target = $region20
        $region19: #{tpu_custom_call.1} parent=11 // pred_region
          %155 = vsyncadd [#allocation10], 0
          %s157 = sshll.u32 %s2, 4
          %s158 = int_to_ptr.hbm [resolvable:$true] %s157
          %s159 = sshll.u32 [#allocation11], 4
          %s160 = int_to_ptr.vmem [resolvable:$true] %s159
          %162 = dma.hbm_to_vmem [thread:$0]  %s158, 32, %s160, [#allocation10]
        $region20: #{tpu_custom_call.1} parent=11 // pred_fallthru
          _
      $region12: #{tpu_custom_call.1} parent=5 // pred_fallthru
        _
      %p163 = scmp.lt.s32.totalorder %s16, 4
      // Predicated region
      $region21: #{tpu_custom_call.1} parent=5 // pred_check
        %p164 = pneg %p163
      $region22: #{tpu_custom_call.1} parent=5 // pred_check_branch
        %166 = sbr.rel (%p164) target = $region24
      $region23: #{tpu_custom_call.1} parent=5 // pred_region
        // Predicated region
        $region25: #{tpu_custom_call.1} parent=23 // pred_check
          %p167 = pneg %p48
        $region26: #{tpu_custom_call.1} parent=23 // pred_check_branch
          %169 = sbr.rel (%p167) target = $region28
        $region27: #{tpu_custom_call.1} parent=23 // pred_region
          %s170 = sand.u32 %s38, 1
          %s171 = scalar_lea.sflag [#allocation7], %s170
          %s172 = sand.u32 %s38, 1
          %s173 = smul.addr %s172, 384
          %s174 = scalar_lea.vmem [#allocation6], %s173
          %s175 = smul.u32 4, %s24
          %177 = vsyncadd %s171, 0
          %s178 = smul.addr %s175, 12
          %s179 = smul.addr %s178, 8
          %s180 = scalar_lea.hbm %s0, %s179
          %s181 = sshll.u32 %s180, 4
          %s182 = int_to_ptr.hbm [resolvable:$true] %s181
          %s183 = sshll.u32 %s174, 4
          %s184 = int_to_ptr.vmem [resolvable:$true] %s183
          %189 = dma.hbm_to_vmem [thread:$0]  %s182, 6144, %s184, %s171, 1536, 1536, 96
        $region28: #{tpu_custom_call.1} parent=23 // pred_fallthru
          _
      $region24: #{tpu_custom_call.1} parent=5 // pred_fallthru
        _
      %p190 = scmp.le.s32.totalorder 1, %s16
      %p191 = scmp.lt.s32.totalorder %s16, 5
      %p192 = pnand %p190, %p191
      %p193 = pneg %p192
      // Predicated region
      $region29: #{tpu_custom_call.1} parent=5 // pred_check
        _
      $region30: #{tpu_custom_call.1} parent=5 // pred_check_branch
        %195 = sbr.rel (%p192) target = $region32
      $region31: #{tpu_custom_call.1} parent=5 // pred_region
        %s196 = ssub.s32 %s16, 1
        %s197 = sand.u32 %s41, 1
        %s198 = scalar_lea.sflag [#allocation7], %s197
        %s199 = sand.u32 %s41, 1
        %s200 = smul.addr %s199, 384
        %s201 = scalar_lea.vmem [#allocation6], %s200
        // Predicated region
        $region33: #{tpu_custom_call.1} parent=31 // pred_check
          %p202 = pneg %p54
        $region34: #{tpu_custom_call.1} parent=31 // pred_check_branch
          %204 = sbr.rel (%p202) target = $region36
        $region35: #{tpu_custom_call.1} parent=31 // pred_region
          %206 = dma.done %s198, 6144
        $region36: #{tpu_custom_call.1} parent=31 // pred_fallthru
          _
        // Predicated region
        $region37: #{tpu_custom_call.1} parent=31 // pred_check
          %p207 = pneg %p75
        $region38: #{tpu_custom_call.1} parent=31 // pred_check_branch
          %209 = sbr.rel (%p207) target = $region40
        $region39: #{tpu_custom_call.1} parent=31 // pred_region
          %211 = dma.done [#allocation10], 24576
        $region40: #{tpu_custom_call.1} parent=31 // pred_fallthru
          _
        // Predicated region
        $region41: #{tpu_custom_call.1} parent=31 // pred_check
          %p212 = pneg %p96
        $region42: #{tpu_custom_call.1} parent=31 // pred_check_branch
          %214 = sbr.rel (%p212) target = $region44
        $region43: #{tpu_custom_call.1} parent=31 // pred_region
          %216 = dma.done [#allocation10], 32
        $region44: #{tpu_custom_call.1} parent=31 // pred_fallthru
          _
        %s217 = sand.u32 %s41, 1
        %s218 = scalar_lea.sflag [#allocation7], %s217
        %s219 = sand.u32 %s41, 1
        %s220 = smul.addr %s219, 384
        %s221 = scalar_lea.vmem [#allocation6], %s220
        %p222 = pneg %p54
        %p223 = pneg %p51
        %p224 = pneg %p75
        %p225 = pneg %p72
        %p226 = pneg %p96
        %p227 = pneg %p93
        %p228 = pneg %p122
        %p229 = pneg %p119
        %s230 = sand.u32 %s109, 1
        %s231 = scalar_lea.sflag [#allocation8], %s230
        %s232 = sand.u32 %s109, 1
        %s233 = smul.addr %s232, 8
        %s234 = scalar_lea.vmem [#allocation12], %s233
        %s235 = smul.u32 4, %s26
        %v236 = vld [vmem:[%s201] sm:$0xff]
        %v237 = vld [vmem:[%s201 + $0x8] sm:$0xff]
        %v238 = vld [vmem:[%s201 + $0x10] sm:$0xff]
        %v239 = vld [vmem:[%s201 + $0x18] sm:$0xff]
        %v240 = vld [vmem:[%s201 + $0x20] sm:$0xff]
        %v241 = vld [vmem:[%s201 + $0x28] sm:$0xff]
        %v242 = vld [vmem:[%s201 + $0x30] sm:$0xff]
        %v243 = vld [vmem:[%s201 + $0x38] sm:$0xff]
        %v244 = vld [vmem:[%s201 + $0x40] sm:$0xff]
        %v245 = vld [vmem:[%s201 + $0x48] sm:$0xff]
        %v246 = vld [vmem:[%s201 + $0x50] sm:$0xff]
        %v247 = vld [vmem:[%s201 + $0x58] sm:$0xff]
        %v248 = vld [vmem:[%s201 + $0x60] sm:$0xff]
        %v249 = vld [vmem:[%s201 + $0x68] sm:$0xff]
        %v250 = vld [vmem:[%s201 + $0x70] sm:$0xff]
        %v251 = vld [vmem:[%s201 + $0x78] sm:$0xff]
        %v252 = vld [vmem:[%s201 + $0x80] sm:$0xff]
        %v253 = vld [vmem:[%s201 + $0x88] sm:$0xff]
        %v254 = vld [vmem:[%s201 + $0x90] sm:$0xff]
        %v255 = vld [vmem:[%s201 + $0x98] sm:$0xff]
        %v256 = vld [vmem:[%s201 + $0xa0] sm:$0xff]
        %v257 = vld [vmem:[%s201 + $0xa8] sm:$0xff]
        %v258 = vld [vmem:[%s201 + $0xb0] sm:$0xff]
        %v259 = vld [vmem:[%s201 + $0xb8] sm:$0xff]
        %v260 = vld [vmem:[%s201 + $0xc0] sm:$0xff]
        %v261 = vld [vmem:[%s201 + $0xc8] sm:$0xff]
        %v262 = vld [vmem:[%s201 + $0xd0] sm:$0xff]
        %v263 = vld [vmem:[%s201 + $0xd8] sm:$0xff]
        %v264 = vld [vmem:[%s201 + $0xe0] sm:$0xff]
        %v265 = vld [vmem:[%s201 + $0xe8] sm:$0xff]
        %v266 = vld [vmem:[%s201 + $0xf0] sm:$0xff]
        %v267 = vld [vmem:[%s201 + $0xf8] sm:$0xff]
        %v268 = vld [vmem:[%s201 + $0x100] sm:$0xff]
        %v269 = vld [vmem:[%s201 + $0x108] sm:$0xff]
        %v270 = vld [vmem:[%s201 + $0x110] sm:$0xff]
        %v271 = vld [vmem:[%s201 + $0x118] sm:$0xff]
        %v272 = vld [vmem:[%s201 + $0x120] sm:$0xff]
        %v273 = vld [vmem:[%s201 + $0x128] sm:$0xff]
        %v274 = vld [vmem:[%s201 + $0x130] sm:$0xff]
        %v275 = vld [vmem:[%s201 + $0x138] sm:$0xff]
        %v276 = vld [vmem:[%s201 + $0x140] sm:$0xff]
        %v277 = vld [vmem:[%s201 + $0x148] sm:$0xff]
        %v278 = vld [vmem:[%s201 + $0x150] sm:$0xff]
        %v279 = vld [vmem:[%s201 + $0x158] sm:$0xff]
        %v280 = vld [vmem:[%s201 + $0x160] sm:$0xff]
        %v281 = vld [vmem:[%s201 + $0x168] sm:$0xff]
        %v282 = vld [vmem:[%s201 + $0x170] sm:$0xff]
        %v283 = vld [vmem:[%s201 + $0x178] sm:$0xff]
        %v284 = vld [vmem:[#allocation9] sm:$0xff]
        %v285 = vld [vmem:[#allocation9 + $0x8] sm:$0xff]
        %v286 = vld [vmem:[#allocation9 + $0x10] sm:$0xff]
        %v287 = vld [vmem:[#allocation9 + $0x18] sm:$0xff]
        %v288 = vld [vmem:[#allocation9 + $0x20] sm:$0xff]
        %v289 = vld [vmem:[#allocation9 + $0x28] sm:$0xff]
        %v290 = vld [vmem:[#allocation9 + $0x30] sm:$0xff]
        %v291 = vld [vmem:[#allocation9 + $0x38] sm:$0xff]
        %v292 = vld [vmem:[#allocation9 + $0x40] sm:$0xff]
        %v293 = vld [vmem:[#allocation9 + $0x48] sm:$0xff]
        %v294 = vld [vmem:[#allocation9 + $0x50] sm:$0xff]
        %v295 = vld [vmem:[#allocation9 + $0x58] sm:$0xff]
        %v296 = vld [vmem:[#allocation9 + $0x60] sm:$0xff]
        %v297 = vld [vmem:[#allocation9 + $0x68] sm:$0xff]
        %v298 = vld [vmem:[#allocation9 + $0x70] sm:$0xff]
        %v299 = vld [vmem:[#allocation9 + $0x78] sm:$0xff]
        %v300 = vld [vmem:[#allocation9 + $0x80] sm:$0xff]
        %v301 = vld [vmem:[#allocation9 + $0x88] sm:$0xff]
        %v302 = vld [vmem:[#allocation9 + $0x90] sm:$0xff]
        %v303 = vld [vmem:[#allocation9 + $0x98] sm:$0xff]
        %v304 = vld [vmem:[#allocation9 + $0xa0] sm:$0xff]
        %v305 = vld [vmem:[#allocation9 + $0xa8] sm:$0xff]
        %v306 = vld [vmem:[#allocation9 + $0xb0] sm:$0xff]
        %v307 = vld [vmem:[#allocation9 + $0xb8] sm:$0xff]
        %v308 = vld [vmem:[#allocation9 + $0xc0] sm:$0xff]
        %v309 = vld [vmem:[#allocation9 + $0xc8] sm:$0xff]
        %v310 = vld [vmem:[#allocation9 + $0xd0] sm:$0xff]
        %v311 = vld [vmem:[#allocation9 + $0xd8] sm:$0xff]
        %v312 = vld [vmem:[#allocation9 + $0xe0] sm:$0xff]
        %v313 = vld [vmem:[#allocation9 + $0xe8] sm:$0xff]
        %v314 = vld [vmem:[#allocation9 + $0xf0] sm:$0xff]
        %v315 = vld [vmem:[#allocation9 + $0xf8] sm:$0xff]
        %v316 = vld [vmem:[#allocation9 + $0x100] sm:$0xff]
        %v317 = vld [vmem:[#allocation9 + $0x108] sm:$0xff]
        %v318 = vld [vmem:[#allocation9 + $0x110] sm:$0xff]
        %v319 = vld [vmem:[#allocation9 + $0x118] sm:$0xff]
        %v320 = vld [vmem:[#allocation9 + $0x120] sm:$0xff]
        %v321 = vld [vmem:[#allocation9 + $0x128] sm:$0xff]
        %v322 = vld [vmem:[#allocation9 + $0x130] sm:$0xff]
        %v323 = vld [vmem:[#allocation9 + $0x138] sm:$0xff]
        %v324 = vld [vmem:[#allocation9 + $0x140] sm:$0xff]
        %v325 = vld [vmem:[#allocation9 + $0x148] sm:$0xff]
        %v326 = vld [vmem:[#allocation9 + $0x150] sm:$0xff]
        %v327 = vld [vmem:[#allocation9 + $0x158] sm:$0xff]
        %v328 = vld [vmem:[#allocation9 + $0x160] sm:$0xff]
        %v329 = vld [vmem:[#allocation9 + $0x168] sm:$0xff]
        %v330 = vld [vmem:[#allocation9 + $0x170] sm:$0xff]
        %v331 = vld [vmem:[#allocation9 + $0x178] sm:$0xff]
        %v332 = vld [vmem:[#allocation9 + $0x180] sm:$0xff]
        %v333 = vld [vmem:[#allocation9 + $0x188] sm:$0xff]
        %v334 = vld [vmem:[#allocation9 + $0x190] sm:$0xff]
        %v335 = vld [vmem:[#allocation9 + $0x198] sm:$0xff]
        %v336 = vld [vmem:[#allocation9 + $0x1a0] sm:$0xff]
        %v337 = vld [vmem:[#allocation9 + $0x1a8] sm:$0xff]
        %v338 = vld [vmem:[#allocation9 + $0x1b0] sm:$0xff]
        %v339 = vld [vmem:[#allocation9 + $0x1b8] sm:$0xff]
        %v340 = vld [vmem:[#allocation9 + $0x1c0] sm:$0xff]
        %v341 = vld [vmem:[#allocation9 + $0x1c8] sm:$0xff]
        %v342 = vld [vmem:[#allocation9 + $0x1d0] sm:$0xff]
        %v343 = vld [vmem:[#allocation9 + $0x1d8] sm:$0xff]
        %v344 = vld [vmem:[#allocation9 + $0x1e0] sm:$0xff]
        %v345 = vld [vmem:[#allocation9 + $0x1e8] sm:$0xff]
        %v346 = vld [vmem:[#allocation9 + $0x1f0] sm:$0xff]
        %v347 = vld [vmem:[#allocation9 + $0x1f8] sm:$0xff]
        %v348 = vld [vmem:[#allocation9 + $0x200] sm:$0xff]
        %v349 = vld [vmem:[#allocation9 + $0x208] sm:$0xff]
        %v350 = vld [vmem:[#allocation9 + $0x210] sm:$0xff]
        %v351 = vld [vmem:[#allocation9 + $0x218] sm:$0xff]
        %v352 = vld [vmem:[#allocation9 + $0x220] sm:$0xff]
        %v353 = vld [vmem:[#allocation9 + $0x228] sm:$0xff]
        %v354 = vld [vmem:[#allocation9 + $0x230] sm:$0xff]
        %v355 = vld [vmem:[#allocation9 + $0x238] sm:$0xff]
        %v356 = vld [vmem:[#allocation9 + $0x240] sm:$0xff]
        %v357 = vld [vmem:[#allocation9 + $0x248] sm:$0xff]
        %v358 = vld [vmem:[#allocation9 + $0x250] sm:$0xff]
        %v359 = vld [vmem:[#allocation9 + $0x258] sm:$0xff]
        %v360 = vld [vmem:[#allocation9 + $0x260] sm:$0xff]
        %v361 = vld [vmem:[#allocation9 + $0x268] sm:$0xff]
        %v362 = vld [vmem:[#allocation9 + $0x270] sm:$0xff]
        %v363 = vld [vmem:[#allocation9 + $0x278] sm:$0xff]
        %v364 = vld [vmem:[#allocation9 + $0x280] sm:$0xff]
        %v365 = vld [vmem:[#allocation9 + $0x288] sm:$0xff]
        %v366 = vld [vmem:[#allocation9 + $0x290] sm:$0xff]
        %v367 = vld [vmem:[#allocation9 + $0x298] sm:$0xff]
        %v368 = vld [vmem:[#allocation9 + $0x2a0] sm:$0xff]
        %v369 = vld [vmem:[#allocation9 + $0x2a8] sm:$0xff]
        %v370 = vld [vmem:[#allocation9 + $0x2b0] sm:$0xff]
        %v371 = vld [vmem:[#allocation9 + $0x2b8] sm:$0xff]
        %v372 = vld [vmem:[#allocation9 + $0x2c0] sm:$0xff]
        %v373 = vld [vmem:[#allocation9 + $0x2c8] sm:$0xff]
        %v374 = vld [vmem:[#allocation9 + $0x2d0] sm:$0xff]
        %v375 = vld [vmem:[#allocation9 + $0x2d8] sm:$0xff]
        %v376 = vld [vmem:[#allocation9 + $0x2e0] sm:$0xff]
        %v377 = vld [vmem:[#allocation9 + $0x2e8] sm:$0xff]
        %v378 = vld [vmem:[#allocation9 + $0x2f0] sm:$0xff]
        %v379 = vld [vmem:[#allocation9 + $0x2f8] sm:$0xff]
        %v380 = vld [vmem:[#allocation9 + $0x300] sm:$0xff]
        %v381 = vld [vmem:[#allocation9 + $0x308] sm:$0xff]
        %v382 = vld [vmem:[#allocation9 + $0x310] sm:$0xff]
        %v383 = vld [vmem:[#allocation9 + $0x318] sm:$0xff]
        %v384 = vld [vmem:[#allocation9 + $0x320] sm:$0xff]
        %v385 = vld [vmem:[#allocation9 + $0x328] sm:$0xff]
        %v386 = vld [vmem:[#allocation9 + $0x330] sm:$0xff]
        %v387 = vld [vmem:[#allocation9 + $0x338] sm:$0xff]
        %v388 = vld [vmem:[#allocation9 + $0x340] sm:$0xff]
        %v389 = vld [vmem:[#allocation9 + $0x348] sm:$0xff]
        %v390 = vld [vmem:[#allocation9 + $0x350] sm:$0xff]
        %v391 = vld [vmem:[#allocation9 + $0x358] sm:$0xff]
        %v392 = vld [vmem:[#allocation9 + $0x360] sm:$0xff]
        %v393 = vld [vmem:[#allocation9 + $0x368] sm:$0xff]
        %v394 = vld [vmem:[#allocation9 + $0x370] sm:$0xff]
        %v395 = vld [vmem:[#allocation9 + $0x378] sm:$0xff]
        %v396 = vld [vmem:[#allocation9 + $0x380] sm:$0xff]
        %v397 = vld [vmem:[#allocation9 + $0x388] sm:$0xff]
        %v398 = vld [vmem:[#allocation9 + $0x390] sm:$0xff]
        %v399 = vld [vmem:[#allocation9 + $0x398] sm:$0xff]
        %v400 = vld [vmem:[#allocation9 + $0x3a0] sm:$0xff]
        %v401 = vld [vmem:[#allocation9 + $0x3a8] sm:$0xff]
        %v402 = vld [vmem:[#allocation9 + $0x3b0] sm:$0xff]
        %v403 = vld [vmem:[#allocation9 + $0x3b8] sm:$0xff]
        %v404 = vld [vmem:[#allocation9 + $0x3c0] sm:$0xff]
        %v405 = vld [vmem:[#allocation9 + $0x3c8] sm:$0xff]
        %v406 = vld [vmem:[#allocation9 + $0x3d0] sm:$0xff]
        %v407 = vld [vmem:[#allocation9 + $0x3d8] sm:$0xff]
        %v408 = vld [vmem:[#allocation9 + $0x3e0] sm:$0xff]
        %v409 = vld [vmem:[#allocation9 + $0x3e8] sm:$0xff]
        %v410 = vld [vmem:[#allocation9 + $0x3f0] sm:$0xff]
        %v411 = vld [vmem:[#allocation9 + $0x3f8] sm:$0xff]
        %v412 = vld [vmem:[#allocation9 + $0x400] sm:$0xff]
        %v413 = vld [vmem:[#allocation9 + $0x408] sm:$0xff]
        %v414 = vld [vmem:[#allocation9 + $0x410] sm:$0xff]
        %v415 = vld [vmem:[#allocation9 + $0x418] sm:$0xff]
        %v416 = vld [vmem:[#allocation9 + $0x420] sm:$0xff]
        %v417 = vld [vmem:[#allocation9 + $0x428] sm:$0xff]
        %v418 = vld [vmem:[#allocation9 + $0x430] sm:$0xff]
        %v419 = vld [vmem:[#allocation9 + $0x438] sm:$0xff]
        %v420 = vld [vmem:[#allocation9 + $0x440] sm:$0xff]
        %v421 = vld [vmem:[#allocation9 + $0x448] sm:$0xff]
        %v422 = vld [vmem:[#allocation9 + $0x450] sm:$0xff]
        %v423 = vld [vmem:[#allocation9 + $0x458] sm:$0xff]
        %v424 = vld [vmem:[#allocation9 + $0x460] sm:$0xff]
        %v425 = vld [vmem:[#allocation9 + $0x468] sm:$0xff]
        %v426 = vld [vmem:[#allocation9 + $0x470] sm:$0xff]
        %v427 = vld [vmem:[#allocation9 + $0x478] sm:$0xff]
        %v428 = vld [vmem:[#allocation9 + $0x480] sm:$0xff]
        %v429 = vld [vmem:[#allocation9 + $0x488] sm:$0xff]
        %v430 = vld [vmem:[#allocation9 + $0x490] sm:$0xff]
        %v431 = vld [vmem:[#allocation9 + $0x498] sm:$0xff]
        %v432 = vld [vmem:[#allocation9 + $0x4a0] sm:$0xff]
        %v433 = vld [vmem:[#allocation9 + $0x4a8] sm:$0xff]
        %v434 = vld [vmem:[#allocation9 + $0x4b0] sm:$0xff]
        %v435 = vld [vmem:[#allocation9 + $0x4b8] sm:$0xff]
        %v436 = vld [vmem:[#allocation9 + $0x4c0] sm:$0xff]
        %v437 = vld [vmem:[#allocation9 + $0x4c8] sm:$0xff]
        %v438 = vld [vmem:[#allocation9 + $0x4d0] sm:$0xff]
        %v439 = vld [vmem:[#allocation9 + $0x4d8] sm:$0xff]
        %v440 = vld [vmem:[#allocation9 + $0x4e0] sm:$0xff]
        %v441 = vld [vmem:[#allocation9 + $0x4e8] sm:$0xff]
        %v442 = vld [vmem:[#allocation9 + $0x4f0] sm:$0xff]
        %v443 = vld [vmem:[#allocation9 + $0x4f8] sm:$0xff]
        %v444 = vld [vmem:[#allocation9 + $0x500] sm:$0xff]
        %v445 = vld [vmem:[#allocation9 + $0x508] sm:$0xff]
        %v446 = vld [vmem:[#allocation9 + $0x510] sm:$0xff]
        %v447 = vld [vmem:[#allocation9 + $0x518] sm:$0xff]
        %v448 = vld [vmem:[#allocation9 + $0x520] sm:$0xff]
        %v449 = vld [vmem:[#allocation9 + $0x528] sm:$0xff]
        %v450 = vld [vmem:[#allocation9 + $0x530] sm:$0xff]
        %v451 = vld [vmem:[#allocation9 + $0x538] sm:$0xff]
        %v452 = vld [vmem:[#allocation9 + $0x540] sm:$0xff]
        %v453 = vld [vmem:[#allocation9 + $0x548] sm:$0xff]
        %v454 = vld [vmem:[#allocation9 + $0x550] sm:$0xff]
        %v455 = vld [vmem:[#allocation9 + $0x558] sm:$0xff]
        %v456 = vld [vmem:[#allocation9 + $0x560] sm:$0xff]
        %v457 = vld [vmem:[#allocation9 + $0x568] sm:$0xff]
        %v458 = vld [vmem:[#allocation9 + $0x570] sm:$0xff]
        %v459 = vld [vmem:[#allocation9 + $0x578] sm:$0xff]
        %v460 = vld [vmem:[#allocation9 + $0x580] sm:$0xff]
        %v461 = vld [vmem:[#allocation9 + $0x588] sm:$0xff]
        %v462 = vld [vmem:[#allocation9 + $0x590] sm:$0xff]
        %v463 = vld [vmem:[#allocation9 + $0x598] sm:$0xff]
        %v464 = vld [vmem:[#allocation9 + $0x5a0] sm:$0xff]
        %v465 = vld [vmem:[#allocation9 + $0x5a8] sm:$0xff]
        %v466 = vld [vmem:[#allocation9 + $0x5b0] sm:$0xff]
        %v467 = vld [vmem:[#allocation9 + $0x5b8] sm:$0xff]
        %v468 = vld [vmem:[#allocation9 + $0x5c0] sm:$0xff]
        %v469 = vld [vmem:[#allocation9 + $0x5c8] sm:$0xff]
        %v470 = vld [vmem:[#allocation9 + $0x5d0] sm:$0xff]
        %v471 = vld [vmem:[#allocation9 + $0x5d8] sm:$0xff]
        %v472 = vld [vmem:[#allocation9 + $0x5e0] sm:$0xff]
        %v473 = vld [vmem:[#allocation9 + $0x5e8] sm:$0xff]
        %v474 = vld [vmem:[#allocation9 + $0x5f0] sm:$0xff]
        %v475 = vld [vmem:[#allocation9 + $0x5f8] sm:$0xff]
        %476 = vmatpush.msra.mxu0 %v299
        %477 = vmatpush.msra.mxu0 %v298
        %478 = vmatpush.msra.mxu0 %v297
        %479 = vmatpush.msra.mxu0 %v296
        %480 = vmatpush.msra.mxu0 %v295
        %481 = vmatpush.msra.mxu0 %v294
        %482 = vmatpush.msra.mxu0 %v293
        %483 = vmatpush.msra.mxu0 %v292
        %484 = vmatpush.msra.mxu0 %v291
        %485 = vmatpush.msra.mxu0 %v290
        %486 = vmatpush.msra.mxu0 %v289
        %487 = vmatpush.msra.mxu0 %v288
        %488 = vmatpush.msra.mxu0 %v287
        %489 = vmatpush.msra.mxu0 %v286
        %490 = vmatpush.msra.mxu0 %v285
        %491 = vmatpush.msra.mxu0 %v284
        %492 = vmatmul.f32.gmra.mxu0 %v236
        %v493 = vpop.f32.mrf.mxu0
        %v494 = vadd.f32 0.0, %v493
        %495 = vmatmul.f32.gmra.mxu0 %v248
        %v496 = vpop.f32.mrf.mxu0
        %v497 = vadd.f32 0.0, %v496
        %498 = vmatmul.f32.gmra.mxu0 %v260
        %v499 = vpop.f32.mrf.mxu0
        %v500 = vadd.f32 0.0, %v499
        %501 = vmatmul.f32.gmra.mxu0 %v272
        %v502 = vpop.f32.mrf.mxu0
        %v503 = vadd.f32 0.0, %v502
        %504 = vdwg.mxu0
        %505 = vmatpush.msra.mxu0 %v315
        %506 = vmatpush.msra.mxu0 %v314
        %507 = vmatpush.msra.mxu0 %v313
        %508 = vmatpush.msra.mxu0 %v312
        %509 = vmatpush.msra.mxu0 %v311
        %510 = vmatpush.msra.mxu0 %v310
        %511 = vmatpush.msra.mxu0 %v309
        %512 = vmatpush.msra.mxu0 %v308
        %513 = vmatpush.msra.mxu0 %v307
        %514 = vmatpush.msra.mxu0 %v306
        %515 = vmatpush.msra.mxu0 %v305
        %516 = vmatpush.msra.mxu0 %v304
        %517 = vmatpush.msra.mxu0 %v303
        %518 = vmatpush.msra.mxu0 %v302
        %519 = vmatpush.msra.mxu0 %v301
        %520 = vmatpush.msra.mxu0 %v300
        %521 = vmatmul.f32.gmra.mxu0 %v237
        %v522 = vpop.f32.mrf.mxu0
        %v523 = vadd.f32 %v494, %v522
        %524 = vmatmul.f32.gmra.mxu0 %v249
        %v525 = vpop.f32.mrf.mxu0
        %v526 = vadd.f32 %v497, %v525
        %527 = vmatmul.f32.gmra.mxu0 %v261
        %v528 = vpop.f32.mrf.mxu0
        %v529 = vadd.f32 %v500, %v528
        %530 = vmatmul.f32.gmra.mxu0 %v273
        %v531 = vpop.f32.mrf.mxu0
        %v532 = vadd.f32 %v503, %v531
        %533 = vdwg.mxu0
        %534 = vmatpush.msra.mxu0 %v331
        %535 = vmatpush.msra.mxu0 %v330
        %536 = vmatpush.msra.mxu0 %v329
        %537 = vmatpush.msra.mxu0 %v328
        %538 = vmatpush.msra.mxu0 %v327
        %539 = vmatpush.msra.mxu0 %v326
        %540 = vmatpush.msra.mxu0 %v325
        %541 = vmatpush.msra.mxu0 %v324
        %542 = vmatpush.msra.mxu0 %v323
        %543 = vmatpush.msra.mxu0 %v322
        %544 = vmatpush.msra.mxu0 %v321
        %545 = vmatpush.msra.mxu0 %v320
        %546 = vmatpush.msra.mxu0 %v319
        %547 = vmatpush.msra.mxu0 %v318
        %548 = vmatpush.msra.mxu0 %v317
        %549 = vmatpush.msra.mxu0 %v316
        %550 = vmatmul.f32.gmra.mxu0 %v238
        %v551 = vpop.f32.mrf.mxu0
        %v552 = vadd.f32 %v523, %v551
        %553 = vmatmul.f32.gmra.mxu0 %v250
        %v554 = vpop.f32.mrf.mxu0
        %v555 = vadd.f32 %v526, %v554
        %556 = vmatmul.f32.gmra.mxu0 %v262
        %v557 = vpop.f32.mrf.mxu0
        %v558 = vadd.f32 %v529, %v557
        %559 = vmatmul.f32.gmra.mxu0 %v274
        %v560 = vpop.f32.mrf.mxu0
        %v561 = vadd.f32 %v532, %v560
        %562 = vdwg.mxu0
        %563 = vmatpush.msra.mxu0 %v347
        %564 = vmatpush.msra.mxu0 %v346
        %565 = vmatpush.msra.mxu0 %v345
        %566 = vmatpush.msra.mxu0 %v344
        %567 = vmatpush.msra.mxu0 %v343
        %568 = vmatpush.msra.mxu0 %v342
        %569 = vmatpush.msra.mxu0 %v341
        %570 = vmatpush.msra.mxu0 %v340
        %571 = vmatpush.msra.mxu0 %v339
        %572 = vmatpush.msra.mxu0 %v338
        %573 = vmatpush.msra.mxu0 %v337
        %574 = vmatpush.msra.mxu0 %v336
        %575 = vmatpush.msra.mxu0 %v335
        %576 = vmatpush.msra.mxu0 %v334
        %577 = vmatpush.msra.mxu0 %v333
        %578 = vmatpush.msra.mxu0 %v332
        %579 = vmatmul.f32.gmra.mxu0 %v239
        %v580 = vpop.f32.mrf.mxu0
        %v581 = vadd.f32 %v552, %v580
        %582 = vmatmul.f32.gmra.mxu0 %v251
        %v583 = vpop.f32.mrf.mxu0
        %v584 = vadd.f32 %v555, %v583
        %585 = vmatmul.f32.gmra.mxu0 %v263
        %v586 = vpop.f32.mrf.mxu0
        %v587 = vadd.f32 %v558, %v586
        %588 = vmatmul.f32.gmra.mxu0 %v275
        %v589 = vpop.f32.mrf.mxu0
        %v590 = vadd.f32 %v561, %v589
        %591 = vdwg.mxu0
        %592 = vmatpush.msra.mxu0 %v363
        %593 = vmatpush.msra.mxu0 %v362
        %594 = vmatpush.msra.mxu0 %v361
        %595 = vmatpush.msra.mxu0 %v360
        %596 = vmatpush.msra.mxu0 %v359
        %597 = vmatpush.msra.mxu0 %v358
        %598 = vmatpush.msra.mxu0 %v357
        %599 = vmatpush.msra.mxu0 %v356
        %600 = vmatpush.msra.mxu0 %v355
        %601 = vmatpush.msra.mxu0 %v354
        %602 = vmatpush.msra.mxu0 %v353
        %603 = vmatpush.msra.mxu0 %v352
        %604 = vmatpush.msra.mxu0 %v351
        %605 = vmatpush.msra.mxu0 %v350
        %606 = vmatpush.msra.mxu0 %v349
        %607 = vmatpush.msra.mxu0 %v348
        %608 = vmatmul.f32.gmra.mxu0 %v240
        %v609 = vpop.f32.mrf.mxu0
        %v610 = vadd.f32 %v581, %v609
        %611 = vmatmul.f32.gmra.mxu0 %v252
        %v612 = vpop.f32.mrf.mxu0
        %v613 = vadd.f32 %v584, %v612
        %614 = vmatmul.f32.gmra.mxu0 %v264
        %v615 = vpop.f32.mrf.mxu0
        %v616 = vadd.f32 %v587, %v615
        %617 = vmatmul.f32.gmra.mxu0 %v276
        %v618 = vpop.f32.mrf.mxu0
        %v619 = vadd.f32 %v590, %v618
        %620 = vdwg.mxu0
        %621 = vmatpush.msra.mxu0 %v379
        %622 = vmatpush.msra.mxu0 %v378
        %623 = vmatpush.msra.mxu0 %v377
        %624 = vmatpush.msra.mxu0 %v376
        %625 = vmatpush.msra.mxu0 %v375
        %626 = vmatpush.msra.mxu0 %v374
        %627 = vmatpush.msra.mxu0 %v373
        %628 = vmatpush.msra.mxu0 %v372
        %629 = vmatpush.msra.mxu0 %v371
        %630 = vmatpush.msra.mxu0 %v370
        %631 = vmatpush.msra.mxu0 %v369
        %632 = vmatpush.msra.mxu0 %v368
        %633 = vmatpush.msra.mxu0 %v367
        %634 = vmatpush.msra.mxu0 %v366
        %635 = vmatpush.msra.mxu0 %v365
        %636 = vmatpush.msra.mxu0 %v364
        %637 = vmatmul.f32.gmra.mxu0 %v241
        %v638 = vpop.f32.mrf.mxu0
        %v639 = vadd.f32 %v610, %v638
        %640 = vmatmul.f32.gmra.mxu0 %v253
        %v641 = vpop.f32.mrf.mxu0
        %v642 = vadd.f32 %v613, %v641
        %643 = vmatmul.f32.gmra.mxu0 %v265
        %v644 = vpop.f32.mrf.mxu0
        %v645 = vadd.f32 %v616, %v644
        %646 = vmatmul.f32.gmra.mxu0 %v277
        %v647 = vpop.f32.mrf.mxu0
        %v648 = vadd.f32 %v619, %v647
        %649 = vdwg.mxu0
        %650 = vmatpush.msra.mxu0 %v395
        %651 = vmatpush.msra.mxu0 %v394
        %652 = vmatpush.msra.mxu0 %v393
        %653 = vmatpush.msra.mxu0 %v392
        %654 = vmatpush.msra.mxu0 %v391
        %655 = vmatpush.msra.mxu0 %v390
        %656 = vmatpush.msra.mxu0 %v389
        %657 = vmatpush.msra.mxu0 %v388
        %658 = vmatpush.msra.mxu0 %v387
        %659 = vmatpush.msra.mxu0 %v386
        %660 = vmatpush.msra.mxu0 %v385
        %661 = vmatpush.msra.mxu0 %v384
        %662 = vmatpush.msra.mxu0 %v383
        %663 = vmatpush.msra.mxu0 %v382
        %664 = vmatpush.msra.mxu0 %v381
        %665 = vmatpush.msra.mxu0 %v380
        %666 = vmatmul.f32.gmra.mxu0 %v242
        %v667 = vpop.f32.mrf.mxu0
        %v668 = vadd.f32 %v639, %v667
        %669 = vmatmul.f32.gmra.mxu0 %v254
        %v670 = vpop.f32.mrf.mxu0
        %v671 = vadd.f32 %v642, %v670
        %672 = vmatmul.f32.gmra.mxu0 %v266
        %v673 = vpop.f32.mrf.mxu0
        %v674 = vadd.f32 %v645, %v673
        %675 = vmatmul.f32.gmra.mxu0 %v278
        %v676 = vpop.f32.mrf.mxu0
        %v677 = vadd.f32 %v648, %v676
        %678 = vdwg.mxu0
        %679 = vmatpush.msra.mxu0 %v411
        %680 = vmatpush.msra.mxu0 %v410
        %681 = vmatpush.msra.mxu0 %v409
        %682 = vmatpush.msra.mxu0 %v408
        %683 = vmatpush.msra.mxu0 %v407
        %684 = vmatpush.msra.mxu0 %v406
        %685 = vmatpush.msra.mxu0 %v405
        %686 = vmatpush.msra.mxu0 %v404
        %687 = vmatpush.msra.mxu0 %v403
        %688 = vmatpush.msra.mxu0 %v402
        %689 = vmatpush.msra.mxu0 %v401
        %690 = vmatpush.msra.mxu0 %v400
        %691 = vmatpush.msra.mxu0 %v399
        %692 = vmatpush.msra.mxu0 %v398
        %693 = vmatpush.msra.mxu0 %v397
        %694 = vmatpush.msra.mxu0 %v396
        %695 = vmatmul.f32.gmra.mxu0 %v243
        %v696 = vpop.f32.mrf.mxu0
        %v697 = vadd.f32 %v668, %v696
        %698 = vmatmul.f32.gmra.mxu0 %v255
        %v699 = vpop.f32.mrf.mxu0
        %v700 = vadd.f32 %v671, %v699
        %701 = vmatmul.f32.gmra.mxu0 %v267
        %v702 = vpop.f32.mrf.mxu0
        %v703 = vadd.f32 %v674, %v702
        %704 = vmatmul.f32.gmra.mxu0 %v279
        %v705 = vpop.f32.mrf.mxu0
        %v706 = vadd.f32 %v677, %v705
        %707 = vdwg.mxu0
        %708 = vmatpush.msra.mxu0 %v427
        %709 = vmatpush.msra.mxu0 %v426
        %710 = vmatpush.msra.mxu0 %v425
        %711 = vmatpush.msra.mxu0 %v424
        %712 = vmatpush.msra.mxu0 %v423
        %713 = vmatpush.msra.mxu0 %v422
        %714 = vmatpush.msra.mxu0 %v421
        %715 = vmatpush.msra.mxu0 %v420
        %716 = vmatpush.msra.mxu0 %v419
        %717 = vmatpush.msra.mxu0 %v418
        %718 = vmatpush.msra.mxu0 %v417
        %719 = vmatpush.msra.mxu0 %v416
        %720 = vmatpush.msra.mxu0 %v415
        %721 = vmatpush.msra.mxu0 %v414
        %722 = vmatpush.msra.mxu0 %v413
        %723 = vmatpush.msra.mxu0 %v412
        %724 = vmatmul.f32.gmra.mxu0 %v244
        %v725 = vpop.f32.mrf.mxu0
        %v726 = vadd.f32 %v697, %v725
        %727 = vmatmul.f32.gmra.mxu0 %v256
        %v728 = vpop.f32.mrf.mxu0
        %v729 = vadd.f32 %v700, %v728
        %730 = vmatmul.f32.gmra.mxu0 %v268
        %v731 = vpop.f32.mrf.mxu0
        %v732 = vadd.f32 %v703, %v731
        %733 = vmatmul.f32.gmra.mxu0 %v280
        %v734 = vpop.f32.mrf.mxu0
        %v735 = vadd.f32 %v706, %v734
        %736 = vdwg.mxu0
        %737 = vmatpush.msra.mxu0 %v443
        %738 = vmatpush.msra.mxu0 %v442
        %739 = vmatpush.msra.mxu0 %v441
        %740 = vmatpush.msra.mxu0 %v440
        %741 = vmatpush.msra.mxu0 %v439
        %742 = vmatpush.msra.mxu0 %v438
        %743 = vmatpush.msra.mxu0 %v437
        %744 = vmatpush.msra.mxu0 %v436
        %745 = vmatpush.msra.mxu0 %v435
        %746 = vmatpush.msra.mxu0 %v434
        %747 = vmatpush.msra.mxu0 %v433
        %748 = vmatpush.msra.mxu0 %v432
        %749 = vmatpush.msra.mxu0 %v431
        %750 = vmatpush.msra.mxu0 %v430
        %751 = vmatpush.msra.mxu0 %v429
        %752 = vmatpush.msra.mxu0 %v428
        %753 = vmatmul.f32.gmra.mxu0 %v245
        %v754 = vpop.f32.mrf.mxu0
        %v755 = vadd.f32 %v726, %v754
        %756 = vmatmul.f32.gmra.mxu0 %v257
        %v757 = vpop.f32.mrf.mxu0
        %v758 = vadd.f32 %v729, %v757
        %759 = vmatmul.f32.gmra.mxu0 %v269
        %v760 = vpop.f32.mrf.mxu0
        %v761 = vadd.f32 %v732, %v760
        %762 = vmatmul.f32.gmra.mxu0 %v281
        %v763 = vpop.f32.mrf.mxu0
        %v764 = vadd.f32 %v735, %v763
        %765 = vdwg.mxu0
        %766 = vmatpush.msra.mxu0 %v459
        %767 = vmatpush.msra.mxu0 %v458
        %768 = vmatpush.msra.mxu0 %v457
        %769 = vmatpush.msra.mxu0 %v456
        %770 = vmatpush.msra.mxu0 %v455
        %771 = vmatpush.msra.mxu0 %v454
        %772 = vmatpush.msra.mxu0 %v453
        %773 = vmatpush.msra.mxu0 %v452
        %774 = vmatpush.msra.mxu0 %v451
        %775 = vmatpush.msra.mxu0 %v450
        %776 = vmatpush.msra.mxu0 %v449
        %777 = vmatpush.msra.mxu0 %v448
        %778 = vmatpush.msra.mxu0 %v447
        %779 = vmatpush.msra.mxu0 %v446
        %780 = vmatpush.msra.mxu0 %v445
        %781 = vmatpush.msra.mxu0 %v444
        %782 = vmatmul.f32.gmra.mxu0 %v246
        %v783 = vpop.f32.mrf.mxu0
        %v784 = vadd.f32 %v755, %v783
        %785 = vmatmul.f32.gmra.mxu0 %v258
        %v786 = vpop.f32.mrf.mxu0
        %v787 = vadd.f32 %v758, %v786
        %788 = vmatmul.f32.gmra.mxu0 %v270
        %v789 = vpop.f32.mrf.mxu0
        %v790 = vadd.f32 %v761, %v789
        %791 = vmatmul.f32.gmra.mxu0 %v282
        %v792 = vpop.f32.mrf.mxu0
        %v793 = vadd.f32 %v764, %v792
        %794 = vdwg.mxu0
        %795 = vmatpush.msra.mxu0 %v475
        %796 = vmatpush.msra.mxu0 %v474
        %797 = vmatpush.msra.mxu0 %v473
        %798 = vmatpush.msra.mxu0 %v472
        %799 = vmatpush.msra.mxu0 %v471
        %800 = vmatpush.msra.mxu0 %v470
        %801 = vmatpush.msra.mxu0 %v469
        %802 = vmatpush.msra.mxu0 %v468
        %803 = vmatpush.msra.mxu0 %v467
        %804 = vmatpush.msra.mxu0 %v466
        %805 = vmatpush.msra.mxu0 %v465
        %806 = vmatpush.msra.mxu0 %v464
        %807 = vmatpush.msra.mxu0 %v463
        %808 = vmatpush.msra.mxu0 %v462
        %809 = vmatpush.msra.mxu0 %v461
        %810 = vmatpush.msra.mxu0 %v460
        %811 = vmatmul.f32.gmra.mxu0 %v247
        %v812 = vpop.f32.mrf.mxu0
        %v813 = vadd.f32 %v784, %v812
        %814 = vmatmul.f32.gmra.mxu0 %v259
        %v815 = vpop.f32.mrf.mxu0
        %v816 = vadd.f32 %v787, %v815
        %817 = vmatmul.f32.gmra.mxu0 %v271
        %v818 = vpop.f32.mrf.mxu0
        %v819 = vadd.f32 %v790, %v818
        %820 = vmatmul.f32.gmra.mxu0 %v283
        %v821 = vpop.f32.mrf.mxu0
        %v822 = vadd.f32 %v793, %v821
        %823 = vdwg.mxu0
        %p824 = scmp.eq.s32.totalorder %s25, 0
        %p825 = scmp.eq.s32.totalorder %s26, 0
        %p826 = pnand %p824, %p825
        %p827 = pneg %p826
        // Predicated region
        $region45: #{tpu_custom_call.1} parent=31 // pred_check
          _
        $region46: #{tpu_custom_call.1} parent=31 // pred_check_branch
          %829 = sbr.rel (%p826) target = $region48
        $region47: #{tpu_custom_call.1} parent=31 // pred_region
          %830 = vst [vmem:[#allocation2] sm:$0x1] 0.0
          %831 = vst [vmem:[#allocation3] sm:$0x1] 0.0
        $region48: #{tpu_custom_call.1} parent=31 // pred_fallthru
          _
        // Predicated region
        $region49: #{tpu_custom_call.1} parent=31 // pred_check
          %p832 = pneg %p824
        $region50: #{tpu_custom_call.1} parent=31 // pred_check_branch
          %834 = sbr.rel (%p832) target = $region52
        $region51: #{tpu_custom_call.1} parent=31 // pred_region
          %v835 = vld [vmem:[#allocation2] sm:$0x1]
          %v836 = vadd.f32 %v813, %v816
          %v837 = vadd.f32 %v836, %v819
          %v838 = vadd.f32 %v837, %v822
          %v839 = vrot.slane %v838, 4
          %v840 = vadd.f32 %v838, %v839
          %v841 = vrot.slane %v840, 2
          %v842 = vadd.f32 %v840, %v841
          %v843 = vrot.slane %v842, 1
          %v844 = vadd.f32 %v842, %v843
          %v845 = vadd.f32 %v835, %v844
          %846 = vst [vmem:[#allocation2] sm:$0x1] %v845
          %v847 = vld [vmem:[#allocation3] sm:$0x1]
          %v848 = vmul.f32 %v813, %v813
          %v849 = vmul.f32 %v816, %v816
          %v850 = vmul.f32 %v819, %v819
          %v851 = vmul.f32 %v822, %v822
          %v852 = vadd.f32 %v848, %v849
          %v853 = vadd.f32 %v852, %v850
          %v854 = vadd.f32 %v853, %v851
          %v855 = vrot.slane %v854, 4
          %v856 = vadd.f32 %v854, %v855
          %v857 = vrot.slane %v856, 2
          %v858 = vadd.f32 %v856, %v857
          %v859 = vrot.slane %v858, 1
          %v860 = vadd.f32 %v858, %v859
          %v861 = vadd.f32 %v847, %v860
          %862 = vst [vmem:[#allocation3] sm:$0x1] %v861
          %863 = vst [vmem:[%s234] sm:$0xff] 0.0
        $region52: #{tpu_custom_call.1} parent=31 // pred_fallthru
          _
        %p864 = scmp.eq.s32.totalorder %s25, 1
        %p865 = pnand %p864, %p825
        %p866 = pneg %p865
        // Predicated region
        $region53: #{tpu_custom_call.1} parent=31 // pred_check
          _
        $region54: #{tpu_custom_call.1} parent=31 // pred_check_branch
          %868 = sbr.rel (%p865) target = $region56
        $region55: #{tpu_custom_call.1} parent=31 // pred_region
          %v869 = vld [vmem:[#allocation2] sm:$0x1]
          %v870 = vmul.f32 %v869, 0.015625
          %v871 = vld [vmem:[#allocation3] sm:$0x1]
          %v872 = vmul.f32 %v871, 0.015625
          %v873 = vmul.f32 %v870, %v870
          %v874 = vsub.f32 %v872, %v873
          %v875 = vld [vmem:[#allocation11] sm:$0x1]
          %v876 = vadd.f32 %v874, 1e-05
          %v877 = vrsqrt.pop %v876
          %v878 = vmul.f32 %v877, %v876
          %v879 = vmul.f32 %v878, %v877
          %v880 = vmul.f32 0.5, %v879
          %v881 = vsub.f32 1.5, %v880
          %v882 = vmul.f32 %v877, %v881
          %vm883 = vweird.f32 %v876
          %vm884 = vweird.f32 %v877
          %vm885 = vmor %vm883, %vm884
          %v886 = vsel %vm885, %v877, %v882
          %v887 = vmul.f32 %v875, %v886
          %888 = vst [vmem:[#allocation4] sm:$0x1] %v887
          %v889 = vld [vmem:[#allocation11 + $0x1] sm:$0x1]
          %v890 = vmul.f32 %v870, %v887
          %v891 = vsub.f32 %v889, %v890
          %892 = vst [vmem:[#allocation5] sm:$0x1] %v891
        $region56: #{tpu_custom_call.1} parent=31 // pred_fallthru
          _
        // Predicated region
        $region57: #{tpu_custom_call.1} parent=31 // pred_check
          %p893 = pneg %p864
        $region58: #{tpu_custom_call.1} parent=31 // pred_check_branch
          %895 = sbr.rel (%p893) target = $region60
        $region59: #{tpu_custom_call.1} parent=31 // pred_region
          %v896 = vld [vmem:[#allocation4] sm:$0x1]
          %v898 = vperm.slane %v896, 0
          %v900 = vmul.f32 %v813, %v898
          %v901 = vmul.f32 %v816, %v898
          %v902 = vmul.f32 %v819, %v898
          %v903 = vmul.f32 %v822, %v898
          %v904 = vld [vmem:[#allocation5] sm:$0x1]
          %v906 = vperm.slane %v904, 0
          %v908 = vadd.f32 %v900, %v906
          %v909 = vadd.f32 %v901, %v906
          %v910 = vadd.f32 %v902, %v906
          %v911 = vadd.f32 %v903, %v906
          %v912 = vmax.f32 %v908, 0.0
          %v913 = vmax.f32 %v909, 0.0
          %v914 = vmax.f32 %v910, 0.0
          %v915 = vmax.f32 %v911, 0.0
          %vm916 = vcmask 1043456
          %v917 = vsel %vm916, %v912, 0.0
          %v918 = vrot.slane %v917, 4
          %v919 = vadd.f32 %v917, %v918
          %v920 = vrot.slane %v919, 2
          %v921 = vadd.f32 %v919, %v920
          %v922 = vrot.slane %v921, 1
          %v923 = vadd.f32 %v921, %v922
          %v924 = vmul.f32 %v923, 0.25
          %925 = vst [vmem:[%s234] sm:$0x1] %v924
          %v927 = vrot.slane %v912, 4
          %v929 = vsel %vm916, %v927, 0.0
          %v930 = vrot.slane %v929, 4
          %v931 = vadd.f32 %v929, %v930
          %v932 = vrot.slane %v931, 2
          %v933 = vadd.f32 %v931, %v932
          %v934 = vrot.slane %v933, 1
          %v935 = vadd.f32 %v933, %v934
          %v936 = vmul.f32 %v935, 0.25
          %937 = vst [vmem:[%s234 + $0x1] sm:$0x1] %v936
          %v938 = vsel %vm916, %v913, 0.0
          %v939 = vrot.slane %v938, 4
          %v940 = vadd.f32 %v938, %v939
          %v941 = vrot.slane %v940, 2
          %v942 = vadd.f32 %v940, %v941
          %v943 = vrot.slane %v942, 1
          %v944 = vadd.f32 %v942, %v943
          %v945 = vmul.f32 %v944, 0.25
          %946 = vst [vmem:[%s234 + $0x2] sm:$0x1] %v945
          %v948 = vrot.slane %v913, 4
          %v950 = vsel %vm916, %v948, 0.0
          %v951 = vrot.slane %v950, 4
          %v952 = vadd.f32 %v950, %v951
          %v953 = vrot.slane %v952, 2
          %v954 = vadd.f32 %v952, %v953
          %v955 = vrot.slane %v954, 1
          %v956 = vadd.f32 %v954, %v955
          %v957 = vmul.f32 %v956, 0.25
          %958 = vst [vmem:[%s234 + $0x3] sm:$0x1] %v957
          %v959 = vsel %vm916, %v914, 0.0
          %v960 = vrot.slane %v959, 4
          %v961 = vadd.f32 %v959, %v960
          %v962 = vrot.slane %v961, 2
          %v963 = vadd.f32 %v961, %v962
          %v964 = vrot.slane %v963, 1
          %v965 = vadd.f32 %v963, %v964
          %v966 = vmul.f32 %v965, 0.25
          %967 = vst [vmem:[%s234 + $0x4] sm:$0x1] %v966
          %v969 = vrot.slane %v914, 4
          %v971 = vsel %vm916, %v969, 0.0
          %v972 = vrot.slane %v971, 4
          %v973 = vadd.f32 %v971, %v972
          %v974 = vrot.slane %v973, 2
          %v975 = vadd.f32 %v973, %v974
          %v976 = vrot.slane %v975, 1
          %v977 = vadd.f32 %v975, %v976
          %v978 = vmul.f32 %v977, 0.25
          %979 = vst [vmem:[%s234 + $0x5] sm:$0x1] %v978
          %v980 = vsel %vm916, %v915, 0.0
          %v981 = vrot.slane %v980, 4
          %v982 = vadd.f32 %v980, %v981
          %v983 = vrot.slane %v982, 2
          %v984 = vadd.f32 %v982, %v983
          %v985 = vrot.slane %v984, 1
          %v986 = vadd.f32 %v984, %v985
          %v987 = vmul.f32 %v986, 0.25
          %988 = vst [vmem:[%s234 + $0x6] sm:$0x1] %v987
          %v990 = vrot.slane %v915, 4
          %v992 = vsel %vm916, %v990, 0.0
          %v993 = vrot.slane %v992, 4
          %v994 = vadd.f32 %v992, %v993
          %v995 = vrot.slane %v994, 2
          %v996 = vadd.f32 %v994, %v995
          %v997 = vrot.slane %v996, 1
          %v998 = vadd.f32 %v996, %v997
          %v999 = vmul.f32 %v998, 0.25
          %1000 = vst [vmem:[%s234 + $0x7] sm:$0x1] %v999
        $region60: #{tpu_custom_call.1} parent=31 // pred_fallthru
          _
        %s1001 = sand.u32 %s109, 1
        %s1002 = scalar_lea.sflag [#allocation8], %s1001
        %s1003 = sand.u32 %s109, 1
        %s1004 = smul.addr %s1003, 8
        %s1005 = scalar_lea.vmem [#allocation12], %s1004
        // Predicated region
        $region61: #{tpu_custom_call.1} parent=31 // pred_check
          %p1006 = pneg %p119
        $region62: #{tpu_custom_call.1} parent=31 // pred_check_branch
          %1008 = sbr.rel (%p1006) target = $region64
        $region63: #{tpu_custom_call.1} parent=31 // pred_region
          %1010 = vsyncadd %s1002, 0
          %s1011 = smul.addr %s26, 8
          %s1012 = scalar_lea.hbm %s3, %s1011
          %s1014 = sshll.u32 %s1005, 4
          %s1015 = int_to_ptr.vmem [resolvable:$true] %s1014
          %s1016 = sshll.u32 %s1012, 4
          %s1017 = int_to_ptr.hbm [resolvable:$true] %s1016
          %1019 = dma.vmem_to_hbm [thread:$0]  %s1015, 128, %s1017, %s1002
        $region64: #{tpu_custom_call.1} parent=31 // pred_fallthru
          _
      $region32: #{tpu_custom_call.1} parent=5 // pred_fallthru
        _
      %p1020 = scmp.le.s32.totalorder 2, %s16
      // Predicated region
      $region65: #{tpu_custom_call.1} parent=5 // pred_check
        %p1021 = pneg %p1020
      $region66: #{tpu_custom_call.1} parent=5 // pred_check_branch
        %1023 = sbr.rel (%p1021) target = $region68
      $region67: #{tpu_custom_call.1} parent=5 // pred_region
        %s1024 = ssub.s32 %s16, 2
        // Predicated region
        $region69: #{tpu_custom_call.1} parent=67 // pred_check
          %p1025 = pneg %p125
        $region70: #{tpu_custom_call.1} parent=67 // pred_check_branch
          %1027 = sbr.rel (%p1025) target = $region72
        $region71: #{tpu_custom_call.1} parent=67 // pred_region
          %s1028 = sand.u32 %s110, 1
          %s1029 = scalar_lea.sflag [#allocation8], %s1028
          %s1030 = sand.u32 %s110, 1
          %s1031 = smul.addr %s1030, 8
          %s1032 = scalar_lea.vmem [#allocation12], %s1031
          %1034 = dma.done %s1029, 128
        $region72: #{tpu_custom_call.1} parent=67 // pred_fallthru
          _
      $region68: #{tpu_custom_call.1} parent=5 // pred_fallthru
        _
    $region6: #{tpu_custom_call.1} parent=1 // loop_footer
      %s20 = sadd.s32 1, %s16
    $region7: #{tpu_custom_call.1} parent=1 // loop_footer_branch
      %15 = sbr.rel target = $region3
    $region8: #{tpu_custom_call.1} parent=1 // loop_exit
      _
    %1035 = vsyncpa [#allocation7], 1
    %s1036 = scalar_lea.sflag [#allocation7], 1
    %1037 = vsyncpa %s1036, 1
    %1038 = vsyncpa [#allocation10], 1
    %1039 = vsyncpa [#allocation8], 1
    %s1040 = scalar_lea.sflag [#allocation8], 1
    %1041 = vsyncpa %s1040, 1

</llo_original>
